<compile_context>
chip_gen: v5e
topology: v5e:2x2
jax: 0.10.0
libtpu: 0.0.40
codegen_flags: <defaults>
</compile_context>

<pallas_src>
import functools
import math

import jax
import jax.numpy as jnp
from jax.experimental import pallas as pl
from jax.experimental.pallas import tpu as pltpu


def _round_up(x, m):
    return ((x + m - 1) // m) * m


def _cdiv(a, b):
    return -(-a // b)


def policy_net_kernel(s_ref, start_ref, end_ref, mask_ref,
                      w1s_ref, w1a_ref, w1b_ref, w1c_ref, b1_ref,
                      w2_ref, b2_ref, w3_ref, b3_ref, w4_ref, b4_ref,
                      out_ref, *, action_dim):
    cdt = w2_ref.dtype  # bf16 MXU-input dtype; accumulation stays float32.

    def mxu_in(ref):
        return ref[...].astype(cdt)   # no-op if the caller already feeds bf16

    # Linear 1 (no ReLU in the nn.Sequential).  The concat of
    # [s, start, end, mask] is fused into the matmul by splitting W1 row-wise.
    h = jnp.dot(mxu_in(s_ref), w1s_ref[...], preferred_element_type=jnp.float32)
    h = h + jnp.dot(mxu_in(start_ref), w1a_ref[...], preferred_element_type=jnp.float32)
    h = h + jnp.dot(mxu_in(end_ref), w1b_ref[...], preferred_element_type=jnp.float32)
    h = h + jnp.dot(mxu_in(mask_ref), w1c_ref[...], preferred_element_type=jnp.float32)
    h = h + b1_ref[...]

    # Linear 2 + ReLU
    h = jnp.dot(h.astype(cdt), w2_ref[...], preferred_element_type=jnp.float32) + b2_ref[...]
    h = jnp.maximum(h, 0.0)

    # Linear 3 + ReLU
    h = jnp.dot(h.astype(cdt), w3_ref[...], preferred_element_type=jnp.float32) + b3_ref[...]
    h = jnp.maximum(h, 0.0)

    # Linear 4 (logits); padded lane columns masked before softmax so no
    # probability mass leaks into the padding.
    logits = jnp.dot(h.astype(cdt), w4_ref[...], preferred_element_type=jnp.float32) + b4_ref[...]
    col = jax.lax.broadcasted_iota(jnp.int32, logits.shape, 1)
    logits = jnp.where(col < action_dim, logits, jnp.float32(-1e30))

    # Numerically stable softmax over the lane-dense (128-wide) last axis.
    m = jnp.max(logits, axis=-1, keepdims=True)
    e = jnp.exp(logits - m)
    denom = jnp.sum(e, axis=-1, keepdims=True)
    # TODO(synk): approx reciprocal -> rows sum to 1 only to ~1e-3; swap for an
    # exact divide if downstream needs exactly normalized probabilities.
    out_ref[...] = (e * pl.reciprocal(denom, approx=True)).astype(out_ref.dtype)


def policy_net_forward(s, start, end, mask, params, *, action_dim,
                       batch_tile=512, out_dtype=jnp.bfloat16):
    """Forward pass.  s:[B,N+2,N+2], start/end:[B,N], mask:[B,N-1] (any float
    dtype; bf16 halves the input DMA).  Returns softmax probs [B, action_dim]."""
    B = s.shape[0]
    s_flat = s.reshape(B, -1)                      # view/bitcast, no HBM copy
    d_s, d_st, d_en, d_mk = (s_flat.shape[1], start.shape[1],
                             end.shape[1], mask.shape[1])
    act_pad = params["w4"].shape[1]

    # Batch tiling: 16-sublane rounding (bf16 packing); keep >= 2 grid steps
    # whenever the batch allows so v7x megacore shards across both cores.
    SUB = 16
    batch_tile = max(int(batch_tile), SUB)
    b0 = _round_up(max(B, SUB), SUB)
    n_steps = _cdiv(b0, min(batch_tile, b0))
    if n_steps == 1 and b0 > SUB:
        n_steps = 2
    tb = _round_up(_cdiv(b0, n_steps), SUB)
    b_pad = n_steps * tb
    grid = (n_steps,)

    def pad_batch(a):
        if a.shape[0] == b_pad:
            return a
        return jnp.zeros((b_pad,) + a.shape[1:], a.dtype).at[:a.shape[0]].set(a)

    s_flat, start, end, mask = (pad_batch(a) for a in (s_flat, start, end, mask))

    def act_spec(d):      # batch-tiled activation, full (un-padded) last dim
        return pl.BlockSpec((tb, d), lambda i: (i, 0))

    def const_spec(a):    # full-shape block, constant index -> VMEM-resident
        return pl.BlockSpec(a.shape, lambda i: (0,) * a.ndim)

    weight_names = ("w1_s", "w1_start", "w1_end", "w1_mask", "b1",
                    "w2", "b2", "w3", "b3", "w4", "b4")
    in_specs = ([act_spec(d_s), act_spec(d_st), act_spec(d_en), act_spec(d_mk)]
                + [const_spec(params[n]) for n in weight_names])
    args = [s_flat, start, end, mask] + [params[n] for n in weight_names]

    out = pl.pallas_call(
        functools.partial(policy_net_kernel, action_dim=action_dim),
        grid=grid,
        in_specs=in_specs,
        out_specs=pl.BlockSpec((tb, act_pad), lambda i: (i, 0)),
        out_shape=jax.ShapeDtypeStruct((b_pad, act_pad), out_dtype),
        compiler_params=pltpu.CompilerParams(
            dimension_semantics=("parallel",)),
    )(*args)

    return out[:B, :action_dim]


def init_params(key, N, mid_dim, *, weight_dtype=jnp.bfloat16):
    """nn.Linear-style U(-1/sqrt(fan_in), 1/sqrt(fan_in)) init.
    Weights stored pre-transposed [in, out]; W1 is split row-wise to match the
    (s, start, end, mask) kernel inputs; out dims zero-padded to 128 lanes;
    weights cast to bf16, biases stay f32 (added after f32 MXU accumulation)."""
    d_parts = ((N + 2) * (N + 2), N, N, N - 1)     # s, start, end, mask widths
    in_dim = sum(d_parts)
    hidden = mid_dim * 2
    action_dim = N - 1
    hid_pad = _round_up(hidden, 128)
    act_pad = _round_up(action_dim, 128)

    def linear(k, fi, fo, pi, po):
        kw, kb = jax.random.split(k)
        bound = 1.0 / math.sqrt(fi)
        w = jax.random.uniform(kw, (fi, fo), jnp.float32, -bound, bound)
        b = jax.random.uniform(kb, (1, fo), jnp.float32, -bound, bound)
        w_p = jnp.zeros((pi, po), jnp.float32).at[:fi, :fo].set(w).astype(weight_dtype)
        b_p = jnp.zeros((1, po), jnp.float32).at[:, :fo].set(b)
        return w_p, b_p

    key, k1, k2, k3, k4 = jax.random.split(key, 5)
    params = {}

    # Layer 1, split row-wise along the concat boundaries (rows stay unpadded
    # because each K equals the corresponding activation width).
    w1, params["b1"] = linear(k1, in_dim, hidden, in_dim, hid_pad)
    offs = [0]
    for d in d_parts:
        offs.append(offs[-1] + d)
    for name, lo, hi in zip(("w1_s", "w1_start", "w1_end", "w1_mask"),
                            offs[:-1], offs[1:]):
        params[name] = w1[lo:hi]

    params["w2"], params["b2"] = linear(k2, hidden, hidden, hid_pad, hid_pad)
    params["w3"], params["b3"] = linear(k3, hidden, hidden, hid_pad, hid_pad)
    params["w4"], params["b4"] = linear(k4, hidden, action_dim, hid_pad, act_pad)
    return params


if __name__ == "__main__":
    # Small shapes consistent with the module: N=10, mid_dim=32, batch=2.
    N = 10
    mid_dim = 32
    B = 2

    n_plus2 = N + 2                                  # 12
    action_dim = N - 1                               # 9
    hidden = mid_dim * 2                             # 64

    key = jax.random.PRNGKey(0)
    key, ks, kstart, kend, kmask, kprev, kp = jax.random.split(key, 7)

    # State is fed in bf16 (halves the dominant input DMA; the kernel casts to
    # bf16 at the MXU inputs anyway so precision is unchanged vs. f32 feed).
    s = jax.random.normal(ks, (B, n_plus2, n_plus2), jnp.float32).astype(jnp.bfloat16)
    start = jax.random.normal(kstart, (B, N), jnp.float32).astype(jnp.bfloat16)
    end = jax.random.normal(kend, (B, N), jnp.float32).astype(jnp.bfloat16)
    mask = jax.random.normal(kmask, (B, N - 1), jnp.float32).astype(jnp.bfloat16)
    previous_action = jax.random.normal(kprev, (B,), jnp.float32)  # unused in forward

    params = init_params(kp, N, mid_dim)

    # One jit so wrapper reshape/pad/slice fuse with the pallas_call dispatch.
    fwd = jax.jit(functools.partial(policy_net_forward, action_dim=action_dim))
    action = fwd(s, start, end, mask, params)
    action = jax.block_until_ready(action)
    assert action.shape == (B, action_dim)

    # Pure-JAX reference with the same bf16-weight / f32-accumulate scheme.
    bf = lambda a: a.astype(jnp.bfloat16)
    x = jnp.concatenate([s.reshape(B, -1), start, end, mask], axis=-1)
    w1 = jnp.concatenate([params["w1_s"], params["w1_start"],
                          params["w1_end"], params["w1_mask"]], axis=0)[:, :hidden]
    b1 = params["b1"][:, :hidden]
    w2 = params["w2"][:hidden, :hidden]; b2 = params["b2"][:, :hidden]
    w3 = params["w3"][:hidden, :hidden]; b3 = params["b3"][:, :hidden]
    w4 = params["w4"][:hidden, :action_dim]; b4 = params["b4"][:, :action_dim]
    h = jnp.dot(bf(x), w1, preferred_element_type=jnp.float32) + b1
    h = jnp.maximum(jnp.dot(bf(h), w2, preferred_element_type=jnp.float32) + b2, 0.0)
    h = jnp.maximum(jnp.dot(bf(h), w3, preferred_element_type=jnp.float32) + b3, 0.0)
    logits = jnp.dot(bf(h), w4, preferred_element_type=jnp.float32) + b4
    ref = jax.nn.softmax(logits, axis=-1)

    out_f32 = action.astype(jnp.float32)
    assert jnp.allclose(out_f32, ref, atol=2e-2, rtol=2e-2)
    assert jnp.allclose(jnp.sum(out_f32, axis=-1), 1.0, atol=2e-2)

    print("KERNEL_OK")
</pallas_src>

<mosaic_0001>
module attributes {stable_mosaic.version = 11 : i64} {
  func.func @policy_net_kernel(%arg0: i32, %arg1: memref<16x144xbf16, #tpu.memory_space<vmem>>, %arg2: memref<16x10xbf16, #tpu.memory_space<vmem>>, %arg3: memref<16x10xbf16, #tpu.memory_space<vmem>>, %arg4: memref<16x9xbf16, #tpu.memory_space<vmem>>, %arg5: memref<144x128xbf16, #tpu.memory_space<vmem>>, %arg6: memref<10x128xbf16, #tpu.memory_space<vmem>>, %arg7: memref<10x128xbf16, #tpu.memory_space<vmem>>, %arg8: memref<9x128xbf16, #tpu.memory_space<vmem>>, %arg9: memref<1x128xf32, #tpu.memory_space<vmem>>, %arg10: memref<128x128xbf16, #tpu.memory_space<vmem>>, %arg11: memref<1x128xf32, #tpu.memory_space<vmem>>, %arg12: memref<128x128xbf16, #tpu.memory_space<vmem>>, %arg13: memref<1x128xf32, #tpu.memory_space<vmem>>, %arg14: memref<128x128xbf16, #tpu.memory_space<vmem>>, %arg15: memref<1x128xf32, #tpu.memory_space<vmem>>, %arg16: memref<16x128xbf16, #tpu.memory_space<vmem>>) attributes {dimension_semantics = [#tpu.dimension_semantics<parallel>], iteration_bounds = array<i64: 1>, scalar_prefetch = 0 : i64, scratch_operands = 0 : i64, tpu.core_type = #tpu.core_type<tc>, window_params = [{transform_indices = @transform_0, window_bounds = array<i64: 16, 144>}, {transform_indices = @transform_1, window_bounds = array<i64: 16, 10>}, {transform_indices = @transform_2, window_bounds = array<i64: 16, 10>}, {transform_indices = @transform_3, window_bounds = array<i64: 16, 9>}, {pipeline_mode = #tpu.pipeline_mode<synchronous>, transform_indices = @transform_4, window_bounds = array<i64: 144, 128>}, {pipeline_mode = #tpu.pipeline_mode<synchronous>, transform_indices = @transform_5, window_bounds = array<i64: 10, 128>}, {pipeline_mode = #tpu.pipeline_mode<synchronous>, transform_indices = @transform_6, window_bounds = array<i64: 10, 128>}, {pipeline_mode = #tpu.pipeline_mode<synchronous>, transform_indices = @transform_7, window_bounds = array<i64: 9, 128>}, {pipeline_mode = #tpu.pipeline_mode<synchronous>, transform_indices = @transform_8, window_bounds = array<i64: 1, 128>}, {pipeline_mode = #tpu.pipeline_mode<synchronous>, transform_indices = @transform_9, window_bounds = array<i64: 128, 128>}, {pipeline_mode = #tpu.pipeline_mode<synchronous>, transform_indices = @transform_10, window_bounds = array<i64: 1, 128>}, {pipeline_mode = #tpu.pipeline_mode<synchronous>, transform_indices = @transform_11, window_bounds = array<i64: 128, 128>}, {pipeline_mode = #tpu.pipeline_mode<synchronous>, transform_indices = @transform_12, window_bounds = array<i64: 1, 128>}, {pipeline_mode = #tpu.pipeline_mode<synchronous>, transform_indices = @transform_13, window_bounds = array<i64: 128, 128>}, {pipeline_mode = #tpu.pipeline_mode<synchronous>, transform_indices = @transform_14, window_bounds = array<i64: 1, 128>}, {transform_indices = @transform_15, window_bounds = array<i64: 16, 128>}]} {
    %c0 = arith.constant 0 : index
    %c0_0 = arith.constant 0 : index
    %0 = vector.load %arg1[%c0, %c0_0] : memref<16x144xbf16, #tpu.memory_space<vmem>>, vector<16x144xbf16>
    %c0_1 = arith.constant 0 : index
    %c0_2 = arith.constant 0 : index
    %1 = vector.load %arg5[%c0_1, %c0_2] : memref<144x128xbf16, #tpu.memory_space<vmem>>, vector<144x128xbf16>
    %cst = arith.constant dense<0.000000e+00> : vector<16x128xf32>
    %2 = tpu.matmul %0, %1, %cst {dimension_numbers = #tpu.dot_dimension_numbers<[1], [0], [0], [1], [0, 0, 1, 1], [], []>} : vector<16x144xbf16>, vector<144x128xbf16>, vector<16x128xf32> -> vector<16x128xf32>
    %c0_3 = arith.constant 0 : index
    %c0_4 = arith.constant 0 : index
    %3 = vector.load %arg2[%c0_3, %c0_4] : memref<16x10xbf16, #tpu.memory_space<vmem>>, vector<16x10xbf16>
    %c0_5 = arith.constant 0 : index
    %c0_6 = arith.constant 0 : index
    %4 = vector.load %arg6[%c0_5, %c0_6] : memref<10x128xbf16, #tpu.memory_space<vmem>>, vector<10x128xbf16>
    %cst_7 = arith.constant dense<0.000000e+00> : vector<16x128xf32>
    %5 = tpu.matmul %3, %4, %cst_7 {dimension_numbers = #tpu.dot_dimension_numbers<[1], [0], [0], [1], [0, 0, 1, 1], [], []>} : vector<16x10xbf16>, vector<10x128xbf16>, vector<16x128xf32> -> vector<16x128xf32>
    %6 = arith.addf %2, %5 : vector<16x128xf32>
    %c0_8 = arith.constant 0 : index
    %c0_9 = arith.constant 0 : index
    %7 = vector.load %arg3[%c0_8, %c0_9] : memref<16x10xbf16, #tpu.memory_space<vmem>>, vector<16x10xbf16>
    %c0_10 = arith.constant 0 : index
    %c0_11 = arith.constant 0 : index
    %8 = vector.load %arg7[%c0_10, %c0_11] : memref<10x128xbf16, #tpu.memory_space<vmem>>, vector<10x128xbf16>
    %cst_12 = arith.constant dense<0.000000e+00> : vector<16x128xf32>
    %9 = tpu.matmul %7, %8, %cst_12 {dimension_numbers = #tpu.dot_dimension_numbers<[1], [0], [0], [1], [0, 0, 1, 1], [], []>} : vector<16x10xbf16>, vector<10x128xbf16>, vector<16x128xf32> -> vector<16x128xf32>
    %10 = arith.addf %6, %9 : vector<16x128xf32>
    %c0_13 = arith.constant 0 : index
    %c0_14 = arith.constant 0 : index
    %11 = vector.load %arg4[%c0_13, %c0_14] : memref<16x9xbf16, #tpu.memory_space<vmem>>, vector<16x9xbf16>
    %c0_15 = arith.constant 0 : index
    %c0_16 = arith.constant 0 : index
    %12 = vector.load %arg8[%c0_15, %c0_16] : memref<9x128xbf16, #tpu.memory_space<vmem>>, vector<9x128xbf16>
    %cst_17 = arith.constant dense<0.000000e+00> : vector<16x128xf32>
    %13 = tpu.matmul %11, %12, %cst_17 {dimension_numbers = #tpu.dot_dimension_numbers<[1], [0], [0], [1], [0, 0, 1, 1], [], []>} : vector<16x9xbf16>, vector<9x128xbf16>, vector<16x128xf32> -> vector<16x128xf32>
    %14 = arith.addf %10, %13 : vector<16x128xf32>
    %c0_18 = arith.constant 0 : index
    %c0_19 = arith.constant 0 : index
    %15 = vector.load %arg9[%c0_18, %c0_19] : memref<1x128xf32, #tpu.memory_space<vmem>>, vector<1x128xf32>
    %16 = vector.broadcast %15 : vector<1x128xf32> to vector<16x128xf32>
    %17 = arith.addf %14, %16 : vector<16x128xf32>
    %18 = arith.truncf %17 : vector<16x128xf32> to vector<16x128xbf16>
    %c0_20 = arith.constant 0 : index
    %c0_21 = arith.constant 0 : index
    %19 = vector.load %arg10[%c0_20, %c0_21] : memref<128x128xbf16, #tpu.memory_space<vmem>>, vector<128x128xbf16>
    %cst_22 = arith.constant dense<0.000000e+00> : vector<16x128xf32>
    %20 = tpu.matmul %18, %19, %cst_22 {dimension_numbers = #tpu.dot_dimension_numbers<[1], [0], [0], [1], [0, 0, 1, 1], [], []>} : vector<16x128xbf16>, vector<128x128xbf16>, vector<16x128xf32> -> vector<16x128xf32>
    %c0_23 = arith.constant 0 : index
    %c0_24 = arith.constant 0 : index
    %21 = vector.load %arg11[%c0_23, %c0_24] : memref<1x128xf32, #tpu.memory_space<vmem>>, vector<1x128xf32>
    %22 = vector.broadcast %21 : vector<1x128xf32> to vector<16x128xf32>
    %23 = arith.addf %20, %22 : vector<16x128xf32>
    %cst_25 = arith.constant 0.000000e+00 : f32
    %24 = vector.broadcast %cst_25 : f32 to vector<16x128xf32>
    %25 = arith.maximumf %23, %24 : vector<16x128xf32>
    %26 = arith.truncf %25 : vector<16x128xf32> to vector<16x128xbf16>
    %c0_26 = arith.constant 0 : index
    %c0_27 = arith.constant 0 : index
    %27 = vector.load %arg12[%c0_26, %c0_27] : memref<128x128xbf16, #tpu.memory_space<vmem>>, vector<128x128xbf16>
    %cst_28 = arith.constant dense<0.000000e+00> : vector<16x128xf32>
    %28 = tpu.matmul %26, %27, %cst_28 {dimension_numbers = #tpu.dot_dimension_numbers<[1], [0], [0], [1], [0, 0, 1, 1], [], []>} : vector<16x128xbf16>, vector<128x128xbf16>, vector<16x128xf32> -> vector<16x128xf32>
    %c0_29 = arith.constant 0 : index
    %c0_30 = arith.constant 0 : index
    %29 = vector.load %arg13[%c0_29, %c0_30] : memref<1x128xf32, #tpu.memory_space<vmem>>, vector<1x128xf32>
    %30 = vector.broadcast %29 : vector<1x128xf32> to vector<16x128xf32>
    %31 = arith.addf %28, %30 : vector<16x128xf32>
    %cst_31 = arith.constant 0.000000e+00 : f32
    %32 = vector.broadcast %cst_31 : f32 to vector<16x128xf32>
    %33 = arith.maximumf %31, %32 : vector<16x128xf32>
    %34 = arith.truncf %33 : vector<16x128xf32> to vector<16x128xbf16>
    %c0_32 = arith.constant 0 : index
    %c0_33 = arith.constant 0 : index
    %35 = vector.load %arg14[%c0_32, %c0_33] : memref<128x128xbf16, #tpu.memory_space<vmem>>, vector<128x128xbf16>
    %cst_34 = arith.constant dense<0.000000e+00> : vector<16x128xf32>
    %36 = tpu.matmul %34, %35, %cst_34 {dimension_numbers = #tpu.dot_dimension_numbers<[1], [0], [0], [1], [0, 0, 1, 1], [], []>} : vector<16x128xbf16>, vector<128x128xbf16>, vector<16x128xf32> -> vector<16x128xf32>
    %c0_35 = arith.constant 0 : index
    %c0_36 = arith.constant 0 : index
    %37 = vector.load %arg15[%c0_35, %c0_36] : memref<1x128xf32, #tpu.memory_space<vmem>>, vector<1x128xf32>
    %38 = vector.broadcast %37 : vector<1x128xf32> to vector<16x128xf32>
    %39 = arith.addf %36, %38 : vector<16x128xf32>
    %40 = tpu.iota {dimensions = array<i32: 1>} : vector<16x128xi32>
    %c9_i32 = arith.constant 9 : i32
    %41 = vector.broadcast %c9_i32 : i32 to vector<16x128xi32>
    %42 = arith.cmpi slt, %40, %41 : vector<16x128xi32>
    %cst_37 = arith.constant -1.000000e+30 : f32
    %43 = vector.broadcast %cst_37 : f32 to vector<16x128xf32>
    %44 = arith.select %42, %39, %43 : vector<16x128xi1>, vector<16x128xf32>
    %cst_38 = arith.constant dense<0xFF800000> : vector<16xf32>
    %45 = vector.multi_reduction <maximumf>, %44, %cst_38 [1] : vector<16x128xf32> to vector<16xf32>
    %46 = vector.shape_cast %45 : vector<16xf32> to vector<16x1xf32>
    %47 = vector.broadcast %46 : vector<16x1xf32> to vector<16x128xf32>
    %48 = arith.subf %44, %47 : vector<16x128xf32>
    %49 = math.exp %48 : vector<16x128xf32>
    %cst_39 = arith.constant dense<0.000000e+00> : vector<16xf32>
    %50 = vector.multi_reduction <add>, %49, %cst_39 [1] : vector<16x128xf32> to vector<16xf32>
    %51 = vector.shape_cast %50 : vector<16xf32> to vector<16x1xf32>
    %52 = tpu.reciprocal %51 {approx = true} : vector<16x1xf32> -> vector<16x1xf32>
    %53 = vector.broadcast %52 : vector<16x1xf32> to vector<16x128xf32>
    %54 = arith.mulf %49, %53 : vector<16x128xf32>
    %55 = arith.truncf %54 : vector<16x128xf32> to vector<16x128xbf16>
    %c0_40 = arith.constant 0 : index
    %c0_41 = arith.constant 0 : index
    %56 = vector.load %arg16[%c0_40, %c0_41] : memref<16x128xbf16, #tpu.memory_space<vmem>>, vector<16x128xbf16>
    tpu.vector_store %arg16[%c0_40, %c0_41], %55 {strides = array<i32>} : memref<16x128xbf16, #tpu.memory_space<vmem>>, vector<16x128xbf16>,
    return
  }
  func.func @transform_0(%arg0: i32) -> (i32, i32) {
    %c0_i32 = arith.constant 0 : i32
    %c0_i32_0 = arith.constant 0 : i32
    return %arg0, %c0_i32 : i32, i32
  }
  func.func @transform_1(%arg0: i32) -> (i32, i32) {
    %c0_i32 = arith.constant 0 : i32
    %c0_i32_0 = arith.constant 0 : i32
    return %arg0, %c0_i32 : i32, i32
  }
  func.func @transform_2(%arg0: i32) -> (i32, i32) {
    %c0_i32 = arith.constant 0 : i32
    %c0_i32_0 = arith.constant 0 : i32
    return %arg0, %c0_i32 : i32, i32
  }
  func.func @transform_3(%arg0: i32) -> (i32, i32) {
    %c0_i32 = arith.constant 0 : i32
    %c0_i32_0 = arith.constant 0 : i32
    return %arg0, %c0_i32 : i32, i32
  }
  func.func @transform_4(%arg0: i32) -> (i32, i32) {
    %c0_i32 = arith.constant 0 : i32
    %c0_i32_0 = arith.constant 0 : i32
    %c0_i32_1 = arith.constant 0 : i32
    return %c0_i32, %c0_i32_0 : i32, i32
  }
  func.func @transform_5(%arg0: i32) -> (i32, i32) {
    %c0_i32 = arith.constant 0 : i32
    %c0_i32_0 = arith.constant 0 : i32
    %c0_i32_1 = arith.constant 0 : i32
    return %c0_i32, %c0_i32_0 : i32, i32
  }
  func.func @transform_6(%arg0: i32) -> (i32, i32) {
    %c0_i32 = arith.constant 0 : i32
    %c0_i32_0 = arith.constant 0 : i32
    %c0_i32_1 = arith.constant 0 : i32
    return %c0_i32, %c0_i32_0 : i32, i32
  }
  func.func @transform_7(%arg0: i32) -> (i32, i32) {
    %c0_i32 = arith.constant 0 : i32
    %c0_i32_0 = arith.constant 0 : i32
    %c0_i32_1 = arith.constant 0 : i32
    return %c0_i32, %c0_i32_0 : i32, i32
  }
  func.func @transform_8(%arg0: i32) -> (i32, i32) {
    %c0_i32 = arith.constant 0 : i32
    %c0_i32_0 = arith.constant 0 : i32
    %c0_i32_1 = arith.constant 0 : i32
    return %c0_i32, %c0_i32_0 : i32, i32
  }
  func.func @transform_9(%arg0: i32) -> (i32, i32) {
    %c0_i32 = arith.constant 0 : i32
    %c0_i32_0 = arith.constant 0 : i32
    %c0_i32_1 = arith.constant 0 : i32
    return %c0_i32, %c0_i32_0 : i32, i32
  }
  func.func @transform_10(%arg0: i32) -> (i32, i32) {
    %c0_i32 = arith.constant 0 : i32
    %c0_i32_0 = arith.constant 0 : i32
    %c0_i32_1 = arith.constant 0 : i32
    return %c0_i32, %c0_i32_0 : i32, i32
  }
  func.func @transform_11(%arg0: i32) -> (i32, i32) {
    %c0_i32 = arith.constant 0 : i32
    %c0_i32_0 = arith.constant 0 : i32
    %c0_i32_1 = arith.constant 0 : i32
    return %c0_i32, %c0_i32_0 : i32, i32
  }
  func.func @transform_12(%arg0: i32) -> (i32, i32) {
    %c0_i32 = arith.constant 0 : i32
    %c0_i32_0 = arith.constant 0 : i32
    %c0_i32_1 = arith.constant 0 : i32
    return %c0_i32, %c0_i32_0 : i32, i32
  }
  func.func @transform_13(%arg0: i32) -> (i32, i32) {
    %c0_i32 = arith.constant 0 : i32
    %c0_i32_0 = arith.constant 0 : i32
    %c0_i32_1 = arith.constant 0 : i32
    return %c0_i32, %c0_i32_0 : i32, i32
  }
  func.func @transform_14(%arg0: i32) -> (i32, i32) {
    %c0_i32 = arith.constant 0 : i32
    %c0_i32_0 = arith.constant 0 : i32
    %c0_i32_1 = arith.constant 0 : i32
    return %c0_i32, %c0_i32_0 : i32, i32
  }
  func.func @transform_15(%arg0: i32) -> (i32, i32) {
    %c0_i32 = arith.constant 0 : i32
    %c0_i32_0 = arith.constant 0 : i32
    return %arg0, %c0_i32 : i32, i32
  }
}

</mosaic_0001>

<llo_original>
// kernel: policy_net_forward.1
$region0: #{policy_net_forward.1}
  #allocation0 [shape = 'u32[]', space=smem, size = 0x4, offset = 0x4, fixed_abs, tag = 'smem constant byte address 0x4 - core index']
  #allocation1 [shape = 'u32[72,128]{1,0:T(1,128)}', space=vmem, size = 0x9000, scoped, tag = 'internal scratch']
  %s0 = inlined_call_operand.vmem [shape: bf16[16,144], index: 0, kind: input, shape index: {}]
  %s1 = inlined_call_operand.vmem [shape: bf16[16,10], index: 1, kind: input, shape index: {}]
  %s2 = inlined_call_operand.vmem [shape: bf16[16,10], index: 2, kind: input, shape index: {}]
  %s3 = inlined_call_operand.vmem [shape: bf16[16,9], index: 3, kind: input, shape index: {}]
  %s4 = inlined_call_operand.vmem [shape: bf16[144,128], index: 4, kind: input, shape index: {}]
  %s5 = inlined_call_operand.vmem [shape: bf16[10,128], index: 5, kind: input, shape index: {}]
  %s6 = inlined_call_operand.vmem [shape: bf16[10,128], index: 6, kind: input, shape index: {}]
  %s7 = inlined_call_operand.hbm [shape: bf16[9,128], index: 7, kind: input, shape index: {}]
  %s8 = inlined_call_operand.hbm [shape: f32[1,128], index: 8, kind: input, shape index: {}]
  %s9 = inlined_call_operand.hbm [shape: bf16[128,128], index: 9, kind: input, shape index: {}]
  %s10 = inlined_call_operand.hbm [shape: f32[1,128], index: 10, kind: input, shape index: {}]
  %s11 = inlined_call_operand.hbm [shape: bf16[128,128], index: 11, kind: input, shape index: {}]
  %s12 = inlined_call_operand.hbm [shape: f32[1,128], index: 12, kind: input, shape index: {}]
  %s13 = inlined_call_operand.hbm [shape: bf16[128,128], index: 13, kind: input, shape index: {}]
  %s14 = inlined_call_operand.hbm [shape: f32[1,128], index: 14, kind: input, shape index: {}]
  %s15 = inlined_call_operand.vmem [shape: bf16[16,128], index: 15, kind: output, shape index: {}]
  %s16 = sld [smem:[#allocation0]]
  $region102: #{policy_net_forward.1} parent=0
    _
  %s18 = ssub.s32 1, %s16
  %s19 = scalar_select 0, %s18, %s16
  $region1: #{policy_net_forward.1} parent=0
    #allocation2 [shape = 'u8[4096]{0}', space=vmem, size = 0x1000, scoped, tag = 'input window, operand 7, single buffered']
    #allocation3 [shape = 's32[1]{0}', space=sflag, size = 0x4, scoped, tag = 'scoped memory for policy_net_forward.1']
    #allocation4 [shape = 'u8[512]{0}', space=vmem, size = 0x400, scoped, tag = 'input window, operand 8, single buffered']
    #allocation5 [shape = 's32[1]{0}', space=sflag, size = 0x4, scoped, tag = 'scoped memory for policy_net_forward.1']
    #allocation6 [shape = 'u8[32768]{0}', space=vmem, size = 0x8000, scoped, tag = 'input window, operand 9, single buffered']
    #allocation7 [shape = 'u8[512]{0}', space=vmem, size = 0x400, scoped, tag = 'input window, operand 10, single buffered']
    #allocation8 [shape = 's32[1]{0}', space=sflag, size = 0x4, scoped, tag = 'scoped memory for policy_net_forward.1']
    #allocation9 [shape = 'u8[32768]{0}', space=vmem, size = 0x8000, scoped, tag = 'input window, operand 11, single buffered']
    #allocation10 [shape = 'u8[512]{0}', space=vmem, size = 0x400, scoped, tag = 'input window, operand 12, single buffered']
    #allocation11 [shape = 's32[1]{0}', space=sflag, size = 0x4, scoped, tag = 'scoped memory for policy_net_forward.1']
    #allocation12 [shape = 'u8[32768]{0}', space=vmem, size = 0x8000, scoped, tag = 'input window, operand 13, single buffered']
    #allocation13 [shape = 'u8[512]{0}', space=vmem, size = 0x400, scoped, tag = 'input window, operand 14, single buffered']
    #allocation14 [shape = 's32[1]{0}', space=sflag, size = 0x4, scoped, tag = 'scoped memory for policy_net_forward.1']
    %20 = vsyncpa [#allocation3], 0
    %21 = vsyncpa [#allocation5], 0
    %22 = vsyncpa [#allocation8], 0
    %23 = vsyncpa [#allocation11], 0
    %24 = vsyncpa [#allocation14], 0
    // Predicated region
    $region2: #{policy_net_forward.1} parent=1 // pred_check
      _
    $region3: #{policy_net_forward.1} parent=1 // pred_check_branch
      %26 = sbr.rel (0) target = $region5
    $region4: #{policy_net_forward.1} parent=1 // pred_region
      _
    $region5: #{policy_net_forward.1} parent=1 // pred_fallthru
      _
    // Predicated region
    $region6: #{policy_net_forward.1} parent=1 // pred_check
      _
    $region7: #{policy_net_forward.1} parent=1 // pred_check_branch
      %28 = sbr.rel (0) target = $region9
    $region8: #{policy_net_forward.1} parent=1 // pred_region
      _
    $region9: #{policy_net_forward.1} parent=1 // pred_fallthru
      _
    // Predicated region
    $region10: #{policy_net_forward.1} parent=1 // pred_check
      _
    $region11: #{policy_net_forward.1} parent=1 // pred_check_branch
      %30 = sbr.rel (0) target = $region13
    $region12: #{policy_net_forward.1} parent=1 // pred_region
      _
    $region13: #{policy_net_forward.1} parent=1 // pred_fallthru
      _
    // Predicated region
    $region14: #{policy_net_forward.1} parent=1 // pred_check
      _
    $region15: #{policy_net_forward.1} parent=1 // pred_check_branch
      %32 = sbr.rel (0) target = $region17
    $region16: #{policy_net_forward.1} parent=1 // pred_region
      _
    $region17: #{policy_net_forward.1} parent=1 // pred_fallthru
      _
    // Predicated region
    $region18: #{policy_net_forward.1} parent=1 // pred_check
      _
    $region19: #{policy_net_forward.1} parent=1 // pred_check_branch
      %34 = sbr.rel (0) target = $region21
    $region20: #{policy_net_forward.1} parent=1 // pred_region
      _
    $region21: #{policy_net_forward.1} parent=1 // pred_fallthru
      _
    // Predicated region
    $region22: #{policy_net_forward.1} parent=1 // pred_check
      _
    $region23: #{policy_net_forward.1} parent=1 // pred_check_branch
      %36 = sbr.rel (0) target = $region25
    $region24: #{policy_net_forward.1} parent=1 // pred_region
      _
    $region25: #{policy_net_forward.1} parent=1 // pred_fallthru
      _
    // Predicated region
    $region26: #{policy_net_forward.1} parent=1 // pred_check
      _
    $region27: #{policy_net_forward.1} parent=1 // pred_check_branch
      %38 = sbr.rel (0) target = $region29
    $region28: #{policy_net_forward.1} parent=1 // pred_region
      _
    $region29: #{policy_net_forward.1} parent=1 // pred_fallthru
      _
    // Predicated region
    $region30: #{policy_net_forward.1} parent=1 // pred_check
      _
    $region31: #{policy_net_forward.1} parent=1 // pred_check_branch
      %40 = sbr.rel (0) target = $region33
    $region32: #{policy_net_forward.1} parent=1 // pred_region
      %42 = vsyncadd [#allocation3], 0
      %s43 = sshll.u32 %s7, 4
      %s44 = int_to_ptr.hbm [resolvable:$true] %s43
      %s45 = sshll.u32 [#allocation2], 4
      %s46 = int_to_ptr.vmem [resolvable:$true] %s45
      %51 = dma.hbm_to_vmem [thread:$0]  %s44, 128, %s46, [#allocation3], 64, 64, 4
    $region33: #{policy_net_forward.1} parent=1 // pred_fallthru
      _
    // Predicated region
    $region34: #{policy_net_forward.1} parent=1 // pred_check
      _
    $region35: #{policy_net_forward.1} parent=1 // pred_check_branch
      %53 = sbr.rel (0) target = $region37
    $region36: #{policy_net_forward.1} parent=1 // pred_region
      %55 = vsyncadd [#allocation5], 0
      %s57 = sshll.u32 %s8, 4
      %s58 = int_to_ptr.hbm [resolvable:$true] %s57
      %s59 = sshll.u32 [#allocation4], 4
      %s60 = int_to_ptr.vmem [resolvable:$true] %s59
      %62 = dma.hbm_to_vmem [thread:$0]  %s58, 16, %s60, [#allocation5]
    $region37: #{policy_net_forward.1} parent=1 // pred_fallthru
      _
    // Predicated region
    $region38: #{policy_net_forward.1} parent=1 // pred_check
      _
    $region39: #{policy_net_forward.1} parent=1 // pred_check_branch
      %64 = sbr.rel (0) target = $region41
    $region40: #{policy_net_forward.1} parent=1 // pred_region
      %66 = vsyncadd [#allocation5], 0
      %s67 = sshll.u32 %s9, 4
      %s68 = int_to_ptr.hbm [resolvable:$true] %s67
      %s69 = sshll.u32 [#allocation6], 4
      %s70 = int_to_ptr.vmem [resolvable:$true] %s69
      %75 = dma.hbm_to_vmem [thread:$0]  %s68, 1024, %s70, [#allocation5], 64, 64, 4
    $region41: #{policy_net_forward.1} parent=1 // pred_fallthru
      _
    // Predicated region
    $region42: #{policy_net_forward.1} parent=1 // pred_check
      _
    $region43: #{policy_net_forward.1} parent=1 // pred_check_branch
      %77 = sbr.rel (0) target = $region45
    $region44: #{policy_net_forward.1} parent=1 // pred_region
      %79 = vsyncadd [#allocation8], 0
      %s81 = sshll.u32 %s10, 4
      %s82 = int_to_ptr.hbm [resolvable:$true] %s81
      %s83 = sshll.u32 [#allocation7], 4
      %s84 = int_to_ptr.vmem [resolvable:$true] %s83
      %86 = dma.hbm_to_vmem [thread:$0]  %s82, 16, %s84, [#allocation8]
    $region45: #{policy_net_forward.1} parent=1 // pred_fallthru
      _
    // Predicated region
    $region46: #{policy_net_forward.1} parent=1 // pred_check
      _
    $region47: #{policy_net_forward.1} parent=1 // pred_check_branch
      %88 = sbr.rel (0) target = $region49
    $region48: #{policy_net_forward.1} parent=1 // pred_region
      %90 = vsyncadd [#allocation8], 0
      %s91 = sshll.u32 %s11, 4
      %s92 = int_to_ptr.hbm [resolvable:$true] %s91
      %s93 = sshll.u32 [#allocation9], 4
      %s94 = int_to_ptr.vmem [resolvable:$true] %s93
      %99 = dma.hbm_to_vmem [thread:$0]  %s92, 1024, %s94, [#allocation8], 64, 64, 4
    $region49: #{policy_net_forward.1} parent=1 // pred_fallthru
      _
    // Predicated region
    $region50: #{policy_net_forward.1} parent=1 // pred_check
      _
    $region51: #{policy_net_forward.1} parent=1 // pred_check_branch
      %101 = sbr.rel (0) target = $region53
    $region52: #{policy_net_forward.1} parent=1 // pred_region
      %103 = vsyncadd [#allocation11], 0
      %s105 = sshll.u32 %s12, 4
      %s106 = int_to_ptr.hbm [resolvable:$true] %s105
      %s107 = sshll.u32 [#allocation10], 4
      %s108 = int_to_ptr.vmem [resolvable:$true] %s107
      %110 = dma.hbm_to_vmem [thread:$0]  %s106, 16, %s108, [#allocation11]
    $region53: #{policy_net_forward.1} parent=1 // pred_fallthru
      _
    // Predicated region
    $region54: #{policy_net_forward.1} parent=1 // pred_check
      _
    $region55: #{policy_net_forward.1} parent=1 // pred_check_branch
      %112 = sbr.rel (0) target = $region57
    $region56: #{policy_net_forward.1} parent=1 // pred_region
      %114 = vsyncadd [#allocation11], 0
      %s115 = sshll.u32 %s13, 4
      %s116 = int_to_ptr.hbm [resolvable:$true] %s115
      %s117 = sshll.u32 [#allocation12], 4
      %s118 = int_to_ptr.vmem [resolvable:$true] %s117
      %123 = dma.hbm_to_vmem [thread:$0]  %s116, 1024, %s118, [#allocation11], 64, 64, 4
    $region57: #{policy_net_forward.1} parent=1 // pred_fallthru
      _
    // Predicated region
    $region58: #{policy_net_forward.1} parent=1 // pred_check
      _
    $region59: #{policy_net_forward.1} parent=1 // pred_check_branch
      %125 = sbr.rel (0) target = $region61
    $region60: #{policy_net_forward.1} parent=1 // pred_region
      %127 = vsyncadd [#allocation14], 0
      %s129 = sshll.u32 %s14, 4
      %s130 = int_to_ptr.hbm [resolvable:$true] %s129
      %s131 = sshll.u32 [#allocation13], 4
      %s132 = int_to_ptr.vmem [resolvable:$true] %s131
      %134 = dma.hbm_to_vmem [thread:$0]  %s130, 16, %s132, [#allocation14]
    $region61: #{policy_net_forward.1} parent=1 // pred_fallthru
      _
    // Predicated region
    $region62: #{policy_net_forward.1} parent=1 // pred_check
      _
    $region63: #{policy_net_forward.1} parent=1 // pred_check_branch
      %136 = sbr.rel (0) target = $region65
    $region64: #{policy_net_forward.1} parent=1 // pred_region
      %138 = dma.done [#allocation3], 128
    $region65: #{policy_net_forward.1} parent=1 // pred_fallthru
      _
    // Predicated region
    $region66: #{policy_net_forward.1} parent=1 // pred_check
      _
    $region67: #{policy_net_forward.1} parent=1 // pred_check_branch
      %140 = sbr.rel (0) target = $region69
    $region68: #{policy_net_forward.1} parent=1 // pred_region
      %142 = dma.done [#allocation5], 16
    $region69: #{policy_net_forward.1} parent=1 // pred_fallthru
      _
    // Predicated region
    $region70: #{policy_net_forward.1} parent=1 // pred_check
      _
    $region71: #{policy_net_forward.1} parent=1 // pred_check_branch
      %144 = sbr.rel (0) target = $region73
    $region72: #{policy_net_forward.1} parent=1 // pred_region
      %146 = dma.done [#allocation5], 1024
    $region73: #{policy_net_forward.1} parent=1 // pred_fallthru
      _
    // Predicated region
    $region74: #{policy_net_forward.1} parent=1 // pred_check
      _
    $region75: #{policy_net_forward.1} parent=1 // pred_check_branch
      %148 = sbr.rel (0) target = $region77
    $region76: #{policy_net_forward.1} parent=1 // pred_region
      %150 = dma.done [#allocation8], 16
    $region77: #{policy_net_forward.1} parent=1 // pred_fallthru
      _
    // Predicated region
    $region78: #{policy_net_forward.1} parent=1 // pred_check
      _
    $region79: #{policy_net_forward.1} parent=1 // pred_check_branch
      %152 = sbr.rel (0) target = $region81
    $region80: #{policy_net_forward.1} parent=1 // pred_region
      %154 = dma.done [#allocation8], 1024
    $region81: #{policy_net_forward.1} parent=1 // pred_fallthru
      _
    // Predicated region
    $region82: #{policy_net_forward.1} parent=1 // pred_check
      _
    $region83: #{policy_net_forward.1} parent=1 // pred_check_branch
      %156 = sbr.rel (0) target = $region85
    $region84: #{policy_net_forward.1} parent=1 // pred_region
      %158 = dma.done [#allocation11], 16
    $region85: #{policy_net_forward.1} parent=1 // pred_fallthru
      _
    // Predicated region
    $region86: #{policy_net_forward.1} parent=1 // pred_check
      _
    $region87: #{policy_net_forward.1} parent=1 // pred_check_branch
      %160 = sbr.rel (0) target = $region89
    $region88: #{policy_net_forward.1} parent=1 // pred_region
      %162 = dma.done [#allocation11], 1024
    $region89: #{policy_net_forward.1} parent=1 // pred_fallthru
      _
    // Predicated region
    $region90: #{policy_net_forward.1} parent=1 // pred_check
      _
    $region91: #{policy_net_forward.1} parent=1 // pred_check_branch
      %164 = sbr.rel (0) target = $region93
    $region92: #{policy_net_forward.1} parent=1 // pred_region
      %166 = dma.done [#allocation14], 16
    $region93: #{policy_net_forward.1} parent=1 // pred_fallthru
      _
    %v168 = vld [vmem:[%s0] sm:$0xff]
    %v169 = vld [vmem:[%s0 + $0x8] sm:$0xff]
    %v170 = vld [vmem:[%s4] sm:$0xf]
    %v171 = vld [vmem:[%s4 + $0x4] sm:$0xf]
    %v172 = vld [vmem:[%s4 + $0x8] sm:$0xf]
    %v173 = vld [vmem:[%s4 + $0xc] sm:$0xf]
    %v174 = vld [vmem:[%s4 + $0x10] sm:$0xf]
    %v175 = vld [vmem:[%s4 + $0x14] sm:$0xf]
    %v176 = vld [vmem:[%s4 + $0x18] sm:$0xf]
    %v177 = vld [vmem:[%s4 + $0x1c] sm:$0xf]
    %v178 = vld [vmem:[%s4 + $0x20] sm:$0xf]
    %v179 = vld [vmem:[%s4 + $0x24] sm:$0xf]
    %v180 = vld [vmem:[%s4 + $0x28] sm:$0xf]
    %v181 = vld [vmem:[%s4 + $0x2c] sm:$0xf]
    %v182 = vld [vmem:[%s4 + $0x30] sm:$0xf]
    %v183 = vld [vmem:[%s4 + $0x34] sm:$0xf]
    %v184 = vld [vmem:[%s4 + $0x38] sm:$0xf]
    %v185 = vld [vmem:[%s4 + $0x3c] sm:$0xf]
    %v186 = vld [vmem:[%s4 + $0x40] sm:$0xf]
    %v187 = vld [vmem:[%s4 + $0x44] sm:$0xf]
    %v188 = vld [vmem:[%s1] sm:$0xf]
    %v189 = vld [vmem:[%s1 + $0x4] sm:$0xf]
    %v190 = vld [vmem:[%s5] sm:$0xf]
    %v191 = vld [vmem:[%s5 + $0x4] sm:$0x1]
    %v194 = vunpack.c.l.b16 %v188
    %v195 = vunpack.c.l.b16 %v189
    %v196 = vpack.c.b16 %v195, %v194
    %v199 = vunpack.c.l.b16 %v190
    %v200 = vunpack.c.l.b16 %v191
    %v201 = vpack.c.b16 %v200, %v199
    %vm202 = vcmask 80896
    %v204 = vsel %vm202, %v196, 0
    %vm206 = vcmask 1044480
    %v208 = vsel %vm206, %v201, 0
    %210 = vmatpush.bf16.msra.mxu0 0
    %211 = vmatpush.bf16.msra.mxu0 0
    %212 = vmatpush.bf16.msra.mxu0 0
    %213 = vmatpush.bf16.msra.mxu0 0
    %214 = vmatpush.bf16.msra.mxu0 0
    %215 = vmatpush.bf16.msra.mxu0 0
    %216 = vmatpush.bf16.msra.mxu0 0
    %217 = vmatpush.bf16.msra.mxu0 %v208
    %218 = vmatmul.bf16.gmra.mxu0 %v204
    %v219 = vpop.f32.mrf.mxu0
    %v220 = vadd.f32 0.0, %v219
    %v221 = vpop.f32.mrf.mxu0
    %v222 = vadd.f32 0.0, %v221
    %223 = vdwg.mxu0
    %v226 = vunpack.c.l.b16 %v168
    %v227 = vunpack.c.h.b16 %v168
    %v228 = vunpack.c.l.b16 %v169
    %v229 = vunpack.c.h.b16 %v169
    %v230 = vpack.c.b16 %v228, %v226
    %v231 = vpack.c.b16 %v229, %v227
    %v251 = vunpack.c.l.b16 %v170
    %v252 = vunpack.c.l.b16 %v171
    %v253 = vunpack.c.l.b16 %v172
    %v254 = vunpack.c.l.b16 %v173
    %v255 = vunpack.c.l.b16 %v174
    %v256 = vunpack.c.l.b16 %v175
    %v257 = vunpack.c.l.b16 %v176
    %v258 = vunpack.c.l.b16 %v177
    %v259 = vunpack.c.l.b16 %v178
    %v260 = vunpack.c.l.b16 %v179
    %v261 = vunpack.c.l.b16 %v180
    %v262 = vunpack.c.l.b16 %v181
    %v263 = vunpack.c.l.b16 %v182
    %v264 = vunpack.c.l.b16 %v183
    %v265 = vunpack.c.l.b16 %v184
    %v266 = vunpack.c.l.b16 %v185
    %v267 = vunpack.c.l.b16 %v186
    %v268 = vunpack.c.l.b16 %v187
    %v269 = vpack.c.b16 %v252, %v251
    %v270 = vpack.c.b16 %v254, %v253
    %v271 = vpack.c.b16 %v256, %v255
    %v272 = vpack.c.b16 %v258, %v257
    %v273 = vpack.c.b16 %v260, %v259
    %v274 = vpack.c.b16 %v262, %v261
    %v275 = vpack.c.b16 %v264, %v263
    %v276 = vpack.c.b16 %v266, %v265
    %v277 = vpack.c.b16 %v268, %v267
    %vm287 = vcmask 130048
    %v289 = vsel %vm287, %v231, 0
    %291 = vmatpush.bf16.msra.mxu0 %v276
    %292 = vmatpush.bf16.msra.mxu0 %v275
    %293 = vmatpush.bf16.msra.mxu0 %v274
    %294 = vmatpush.bf16.msra.mxu0 %v273
    %295 = vmatpush.bf16.msra.mxu0 %v272
    %296 = vmatpush.bf16.msra.mxu0 %v271
    %297 = vmatpush.bf16.msra.mxu0 %v270
    %298 = vmatpush.bf16.msra.mxu0 %v269
    %299 = vmatmul.bf16.gmra.mxu0 %v230
    %v300 = vpop.f32.mrf.mxu0
    %v301 = vadd.f32 %v220, %v300
    %v302 = vpop.f32.mrf.mxu0
    %v303 = vadd.f32 %v222, %v302
    %304 = vdwg.mxu0
    %305 = vmatpush.bf16.msra.mxu0 0
    %306 = vmatpush.bf16.msra.mxu0 0
    %307 = vmatpush.bf16.msra.mxu0 0
    %308 = vmatpush.bf16.msra.mxu0 0
    %309 = vmatpush.bf16.msra.mxu0 0
    %310 = vmatpush.bf16.msra.mxu0 0
    %311 = vmatpush.bf16.msra.mxu0 0
    %312 = vmatpush.bf16.msra.mxu0 %v277
    %313 = vmatmul.bf16.gmra.mxu0 %v289
    %v314 = vpop.f32.mrf.mxu0
    %v315 = vadd.f32 %v301, %v314
    %v316 = vpop.f32.mrf.mxu0
    %v317 = vadd.f32 %v303, %v316
    %318 = vdwg.mxu0
    %v319 = vld [vmem:[%s2] sm:$0xf]
    %v320 = vld [vmem:[%s2 + $0x4] sm:$0xf]
    %v321 = vld [vmem:[%s6] sm:$0xf]
    %v322 = vld [vmem:[%s6 + $0x4] sm:$0x1]
    %v325 = vunpack.c.l.b16 %v319
    %v326 = vunpack.c.l.b16 %v320
    %v327 = vpack.c.b16 %v326, %v325
    %v330 = vunpack.c.l.b16 %v321
    %v331 = vunpack.c.l.b16 %v322
    %v332 = vpack.c.b16 %v331, %v330
    %v334 = vsel %vm202, %v327, 0
    %v337 = vsel %vm206, %v332, 0
    %339 = vmatpush.bf16.msra.mxu0 0
    %340 = vmatpush.bf16.msra.mxu0 0
    %341 = vmatpush.bf16.msra.mxu0 0
    %342 = vmatpush.bf16.msra.mxu0 0
    %343 = vmatpush.bf16.msra.mxu0 0
    %344 = vmatpush.bf16.msra.mxu0 0
    %345 = vmatpush.bf16.msra.mxu0 0
    %346 = vmatpush.bf16.msra.mxu0 %v337
    %347 = vmatmul.bf16.gmra.mxu0 %v334
    %v348 = vpop.f32.mrf.mxu0
    %v349 = vadd.f32 0.0, %v348
    %v350 = vpop.f32.mrf.mxu0
    %v351 = vadd.f32 0.0, %v350
    %352 = vdwg.mxu0
    %v353 = vadd.f32 %v315, %v349
    %v354 = vadd.f32 %v317, %v351
    %v355 = vld [vmem:[%s3] sm:$0xf]
    %v356 = vld [vmem:[%s3 + $0x4] sm:$0xf]
    %v357 = vld [vmem:[#allocation2] sm:$0xf]
    %v358 = vld [vmem:[#allocation2 + $0x4] sm:$0x1]
    %v361 = vunpack.c.l.b16 %v355
    %v362 = vunpack.c.l.b16 %v356
    %v363 = vpack.c.b16 %v362, %v361
    %v366 = vunpack.c.l.b16 %v357
    %v367 = vunpack.c.l.b16 %v358
    %v368 = vpack.c.b16 %v367, %v366
    %vm369 = vcmask 72704
    %v371 = vsel %vm369, %v363, 0
    %vm373 = vcmask 1043456
    %v374 = vsel %vm373, 4294967295, 65535
    %v375 = vsel %vm206, %v374, 0
    %v377 = vand.u32 %v368, %v375
    %379 = vmatpush.bf16.msra.mxu0 0
    %380 = vmatpush.bf16.msra.mxu0 0
    %381 = vmatpush.bf16.msra.mxu0 0
    %382 = vmatpush.bf16.msra.mxu0 0
    %383 = vmatpush.bf16.msra.mxu0 0
    %384 = vmatpush.bf16.msra.mxu0 0
    %385 = vmatpush.bf16.msra.mxu0 0
    %386 = vmatpush.bf16.msra.mxu0 %v377
    %387 = vmatmul.bf16.gmra.mxu0 %v371
    %v388 = vpop.f32.mrf.mxu0
    %v389 = vadd.f32 0.0, %v388
    %v390 = vpop.f32.mrf.mxu0
    %v391 = vadd.f32 0.0, %v390
    %392 = vdwg.mxu0
    %v393 = vadd.f32 %v353, %v389
    %v394 = vadd.f32 %v354, %v391
    %v395 = vld [vmem:[#allocation4] sm:$0x1]
    %v397 = vperm.slane %v395, 0
    %v399 = vadd.f32 %v393, %v397
    %v400 = vadd.f32 %v394, %v397
    %v401 = vpack.c.bf16 %v400, %v399
    %v402 = vld [vmem:[#allocation6] sm:$0xf]
    %v403 = vld [vmem:[#allocation6 + $0x4] sm:$0xf]
    %v404 = vld [vmem:[#allocation6 + $0x8] sm:$0xf]
    %v405 = vld [vmem:[#allocation6 + $0xc] sm:$0xf]
    %v406 = vld [vmem:[#allocation6 + $0x10] sm:$0xf]
    %v407 = vld [vmem:[#allocation6 + $0x14] sm:$0xf]
    %v408 = vld [vmem:[#allocation6 + $0x18] sm:$0xf]
    %v409 = vld [vmem:[#allocation6 + $0x1c] sm:$0xf]
    %v410 = vld [vmem:[#allocation6 + $0x20] sm:$0xf]
    %v411 = vld [vmem:[#allocation6 + $0x24] sm:$0xf]
    %v412 = vld [vmem:[#allocation6 + $0x28] sm:$0xf]
    %v413 = vld [vmem:[#allocation6 + $0x2c] sm:$0xf]
    %v414 = vld [vmem:[#allocation6 + $0x30] sm:$0xf]
    %v415 = vld [vmem:[#allocation6 + $0x34] sm:$0xf]
    %v416 = vld [vmem:[#allocation6 + $0x38] sm:$0xf]
    %v417 = vld [vmem:[#allocation6 + $0x3c] sm:$0xf]
    %v418 = vld [vmem:[#allocation7] sm:$0x1]
    %v420 = vperm.slane %v418, 0
    %v438 = vunpack.c.l.b16 %v402
    %v439 = vunpack.c.l.b16 %v403
    %v440 = vunpack.c.l.b16 %v404
    %v441 = vunpack.c.l.b16 %v405
    %v442 = vunpack.c.l.b16 %v406
    %v443 = vunpack.c.l.b16 %v407
    %v444 = vunpack.c.l.b16 %v408
    %v445 = vunpack.c.l.b16 %v409
    %v446 = vunpack.c.l.b16 %v410
    %v447 = vunpack.c.l.b16 %v411
    %v448 = vunpack.c.l.b16 %v412
    %v449 = vunpack.c.l.b16 %v413
    %v450 = vunpack.c.l.b16 %v414
    %v451 = vunpack.c.l.b16 %v415
    %v452 = vunpack.c.l.b16 %v416
    %v453 = vunpack.c.l.b16 %v417
    %v454 = vpack.c.b16 %v439, %v438
    %v455 = vpack.c.b16 %v441, %v440
    %v456 = vpack.c.b16 %v443, %v442
    %v457 = vpack.c.b16 %v445, %v444
    %v458 = vpack.c.b16 %v447, %v446
    %v459 = vpack.c.b16 %v449, %v448
    %v460 = vpack.c.b16 %v451, %v450
    %v461 = vpack.c.b16 %v453, %v452
    %470 = vmatpush.bf16.msra.mxu0 %v461
    %471 = vmatpush.bf16.msra.mxu0 %v460
    %472 = vmatpush.bf16.msra.mxu0 %v459
    %473 = vmatpush.bf16.msra.mxu0 %v458
    %474 = vmatpush.bf16.msra.mxu0 %v457
    %475 = vmatpush.bf16.msra.mxu0 %v456
    %476 = vmatpush.bf16.msra.mxu0 %v455
    %477 = vmatpush.bf16.msra.mxu0 %v454
    %478 = vmatmul.bf16.gmra.mxu0 %v401
    %v479 = vpop.f32.mrf.mxu0
    %v480 = vadd.f32 %v420, %v479
    %v481 = vpop.f32.mrf.mxu0
    %v482 = vadd.f32 %v420, %v481
    %483 = vdwg.mxu0
    %v484 = vmax.f32 %v480, 0.0
    %v485 = vmax.f32 %v482, 0.0
    %v486 = vpack.c.bf16 %v485, %v484
    %v487 = vld [vmem:[#allocation9] sm:$0xf]
    %v488 = vld [vmem:[#allocation9 + $0x4] sm:$0xf]
    %v489 = vld [vmem:[#allocation9 + $0x8] sm:$0xf]
    %v490 = vld [vmem:[#allocation9 + $0xc] sm:$0xf]
    %v491 = vld [vmem:[#allocation9 + $0x10] sm:$0xf]
    %v492 = vld [vmem:[#allocation9 + $0x14] sm:$0xf]
    %v493 = vld [vmem:[#allocation9 + $0x18] sm:$0xf]
    %v494 = vld [vmem:[#allocation9 + $0x1c] sm:$0xf]
    %v495 = vld [vmem:[#allocation9 + $0x20] sm:$0xf]
    %v496 = vld [vmem:[#allocation9 + $0x24] sm:$0xf]
    %v497 = vld [vmem:[#allocation9 + $0x28] sm:$0xf]
    %v498 = vld [vmem:[#allocation9 + $0x2c] sm:$0xf]
    %v499 = vld [vmem:[#allocation9 + $0x30] sm:$0xf]
    %v500 = vld [vmem:[#allocation9 + $0x34] sm:$0xf]
    %v501 = vld [vmem:[#allocation9 + $0x38] sm:$0xf]
    %v502 = vld [vmem:[#allocation9 + $0x3c] sm:$0xf]
    %v503 = vld [vmem:[#allocation10] sm:$0x1]
    %v505 = vperm.slane %v503, 0
    %v523 = vunpack.c.l.b16 %v487
    %v524 = vunpack.c.l.b16 %v488
    %v525 = vunpack.c.l.b16 %v489
    %v526 = vunpack.c.l.b16 %v490
    %v527 = vunpack.c.l.b16 %v491
    %v528 = vunpack.c.l.b16 %v492
    %v529 = vunpack.c.l.b16 %v493
    %v530 = vunpack.c.l.b16 %v494
    %v531 = vunpack.c.l.b16 %v495
    %v532 = vunpack.c.l.b16 %v496
    %v533 = vunpack.c.l.b16 %v497
    %v534 = vunpack.c.l.b16 %v498
    %v535 = vunpack.c.l.b16 %v499
    %v536 = vunpack.c.l.b16 %v500
    %v537 = vunpack.c.l.b16 %v501
    %v538 = vunpack.c.l.b16 %v502
    %v539 = vpack.c.b16 %v524, %v523
    %v540 = vpack.c.b16 %v526, %v525
    %v541 = vpack.c.b16 %v528, %v527
    %v542 = vpack.c.b16 %v530, %v529
    %v543 = vpack.c.b16 %v532, %v531
    %v544 = vpack.c.b16 %v534, %v533
    %v545 = vpack.c.b16 %v536, %v535
    %v546 = vpack.c.b16 %v538, %v537
    %555 = vmatpush.bf16.msra.mxu0 %v546
    %556 = vmatpush.bf16.msra.mxu0 %v545
    %557 = vmatpush.bf16.msra.mxu0 %v544
    %558 = vmatpush.bf16.msra.mxu0 %v543
    %559 = vmatpush.bf16.msra.mxu0 %v542
    %560 = vmatpush.bf16.msra.mxu0 %v541
    %561 = vmatpush.bf16.msra.mxu0 %v540
    %562 = vmatpush.bf16.msra.mxu0 %v539
    %563 = vmatmul.bf16.gmra.mxu0 %v486
    %v564 = vpop.f32.mrf.mxu0
    %v565 = vadd.f32 %v505, %v564
    %v566 = vpop.f32.mrf.mxu0
    %v567 = vadd.f32 %v505, %v566
    %568 = vdwg.mxu0
    %v569 = vmax.f32 %v565, 0.0
    %v570 = vmax.f32 %v567, 0.0
    %v571 = vpack.c.bf16 %v570, %v569
    %v572 = vld [vmem:[#allocation12] sm:$0xf]
    %v573 = vld [vmem:[#allocation12 + $0x4] sm:$0xf]
    %v574 = vld [vmem:[#allocation12 + $0x8] sm:$0xf]
    %v575 = vld [vmem:[#allocation12 + $0xc] sm:$0xf]
    %v576 = vld [vmem:[#allocation12 + $0x10] sm:$0xf]
    %v577 = vld [vmem:[#allocation12 + $0x14] sm:$0xf]
    %v578 = vld [vmem:[#allocation12 + $0x18] sm:$0xf]
    %v579 = vld [vmem:[#allocation12 + $0x1c] sm:$0xf]
    %v580 = vld [vmem:[#allocation12 + $0x20] sm:$0xf]
    %v581 = vld [vmem:[#allocation12 + $0x24] sm:$0xf]
    %v582 = vld [vmem:[#allocation12 + $0x28] sm:$0xf]
    %v583 = vld [vmem:[#allocation12 + $0x2c] sm:$0xf]
    %v584 = vld [vmem:[#allocation12 + $0x30] sm:$0xf]
    %v585 = vld [vmem:[#allocation12 + $0x34] sm:$0xf]
    %v586 = vld [vmem:[#allocation12 + $0x38] sm:$0xf]
    %v587 = vld [vmem:[#allocation12 + $0x3c] sm:$0xf]
    %v588 = vld [vmem:[#allocation13] sm:$0x1]
    %v590 = vperm.slane %v588, 0
    %v608 = vunpack.c.l.b16 %v572
    %v609 = vunpack.c.l.b16 %v573
    %v610 = vunpack.c.l.b16 %v574
    %v611 = vunpack.c.l.b16 %v575
    %v612 = vunpack.c.l.b16 %v576
    %v613 = vunpack.c.l.b16 %v577
    %v614 = vunpack.c.l.b16 %v578
    %v615 = vunpack.c.l.b16 %v579
    %v616 = vunpack.c.l.b16 %v580
    %v617 = vunpack.c.l.b16 %v581
    %v618 = vunpack.c.l.b16 %v582
    %v619 = vunpack.c.l.b16 %v583
    %v620 = vunpack.c.l.b16 %v584
    %v621 = vunpack.c.l.b16 %v585
    %v622 = vunpack.c.l.b16 %v586
    %v623 = vunpack.c.l.b16 %v587
    %v624 = vpack.c.b16 %v609, %v608
    %v625 = vpack.c.b16 %v611, %v610
    %v626 = vpack.c.b16 %v613, %v612
    %v627 = vpack.c.b16 %v615, %v614
    %v628 = vpack.c.b16 %v617, %v616
    %v629 = vpack.c.b16 %v619, %v618
    %v630 = vpack.c.b16 %v621, %v620
    %v631 = vpack.c.b16 %v623, %v622
    %640 = vmatpush.bf16.msra.mxu0 %v631
    %641 = vmatpush.bf16.msra.mxu0 %v630
    %642 = vmatpush.bf16.msra.mxu0 %v629
    %643 = vmatpush.bf16.msra.mxu0 %v628
    %644 = vmatpush.bf16.msra.mxu0 %v627
    %645 = vmatpush.bf16.msra.mxu0 %v626
    %646 = vmatpush.bf16.msra.mxu0 %v625
    %647 = vmatpush.bf16.msra.mxu0 %v624
    %648 = vmatmul.bf16.gmra.mxu0 %v571
    %v649 = vpop.f32.mrf.mxu0
    %v650 = vadd.f32 %v590, %v649
    %v651 = vpop.f32.mrf.mxu0
    %v652 = vadd.f32 %v590, %v651
    %653 = vdwg.mxu0
    %v654 = vlaneseq
    %v655 = vand.u32 %v654, 127
    %vm656 = vcmp.lt.s32.totalorder %v655, 9
    %v657 = vsel %vm656, %v650, -1e+30
    %v658 = vsel %vm656, %v652, -1e+30
    %659 = vmax.xlane.f32.xlu0 %v657
    %v660 = vpop.xlane.xlu0 %659
    %661 = vmax.xlane.f32.xlu0 %v658
    %v662 = vpop.xlane.xlu0 %661
    %v663 = vsub.f32 %v657, %v660
    %v664 = vsub.f32 %v658, %v662
    %v665 = vmul.f32 %v663, 1.442695
    %v666 = vpow.pop %v665
    %v667 = vmul.f32 %v664, 1.442695
    %v668 = vpow.pop %v667
    %669 = vadd.xlane.f32.xlu0 %v666
    %v670 = vpop.xlane.xlu0 %669
    %671 = vadd.xlane.f32.xlu0 %v668
    %v672 = vpop.xlane.xlu0 %671
    %v673 = vrcp.pop %v670
    %v674 = vrcp.pop %v672
    %v675 = vmul.f32 %v666, %v673
    %v676 = vmul.f32 %v668, %v674
    %v677 = vpack.c.bf16 %v675, %v675
    %v678 = vpack.c.bf16 %v676, %v676
    %679 = vst [vmem:[%s15] sm:$0xf] %v677
    %680 = vst [vmem:[%s15 + $0x4] sm:$0xf] %v678
    // Predicated region
    $region94: #{policy_net_forward.1} parent=1 // pred_check
      _
    $region95: #{policy_net_forward.1} parent=1 // pred_check_branch
      %682 = sbr.rel (0) target = $region97
    $region96: #{policy_net_forward.1} parent=1 // pred_region
      _
    $region97: #{policy_net_forward.1} parent=1 // pred_fallthru
      _
    // Predicated region
    $region98: #{policy_net_forward.1} parent=1 // pred_check
      _
    $region99: #{policy_net_forward.1} parent=1 // pred_check_branch
      %684 = sbr.rel (0) target = $region101
    $region100: #{policy_net_forward.1} parent=1 // pred_region
      _
    $region101: #{policy_net_forward.1} parent=1 // pred_fallthru
      _
    %685 = vsyncpa [#allocation3], 1
    %686 = vsyncpa [#allocation5], 1
    %687 = vsyncpa [#allocation8], 1
    %688 = vsyncpa [#allocation11], 1
    %689 = vsyncpa [#allocation14], 1

</llo_original>
